<compile_context>
chip_gen: v7x
topology: tpu7x:2x2x1
jax: 0.10.0
libtpu: 0.0.40
codegen_flags: <defaults>
</compile_context>

<pallas_src>
import jax
import jax.numpy as jnp
from jax.experimental import pallas as pl
from jax.experimental.pallas import tpu as pltpu

NUM_STEPS = 3          # DRSolver default num_steps
GAMMA = 2.0            # ProxObjectivePlusEqualityConstraint default gamma
BOUND = 1000.0         # DRSolver default state_slack_bound


def _make_dr_kernel(d, n, num_steps, bound):
    """Kernel factory closing over the static problem dims.

    Per step:  y = clip(x, lb, ub);  v = 2y - x;  z = v @ W + c;  x += (z - y).
    The reference's prox_{g1} chain (particular solution zeta, metric-weighted
    rhs, null-space Cholesky solve) is pre-composed into the constant matrix W
    and the per-batch vector c in the wrapper, so the loop body is one box prox
    (VPU) + a single MXU matmul + adds.
    """
    f32 = jnp.float32

    def kernel(x_ref, c_ref, w_ref, x_out_ref, gap_out_ref):
        x = x_ref[...]                      # (bt, n_pad)
        c = c_ref[...]                      # (bt, n_pad)
        W = w_ref[...]                      # (n_pad, n_pad)
        n_pad = x.shape[-1]

        # Bounds built from a lane iota; kept as (1, n_pad) rows (implicit
        # sublane broadcast) — no full-tile temporaries, no HBM stream.
        #   col <  d      : state vars,  lb = -BOUND, ub = +BOUND
        #   d <= col < n  : slack vars,  lb = 0,      ub = +BOUND
        #   col >= n      : lane padding, lb = ub = 0  (stays identically 0)
        col = jax.lax.broadcasted_iota(jnp.int32, (1, n_pad), 1)
        lb = jnp.where(col < d, f32(-bound), f32(0.0))
        ub = jnp.where(col < n, f32(bound), f32(0.0))

        delta = jnp.zeros_like(x)
        for _ in range(num_steps):
            # ProxBoxConstraint (ub >= lb always):  clip(x, lb, ub)
            y = jnp.minimum(jnp.maximum(x, lb), ub)
            v = 2.0 * y - x
            # fused ProxObjectivePlusEqualityConstraint (exact: f quadratic, F affine)
            z = jnp.dot(v, W, preferred_element_type=f32) + c
            # DR update; delta reused for the convergence-gap output
            delta = z - y
            x = x + delta

        x_out_ref[...] = x
        gap_out_ref[...] = delta * delta

    return kernel


def _pick_batch_tile(B, batch_tile):
    """Sublane-aligned batch tile; >= 2 grid programs when the batch allows."""
    if B >= 16:
        bt = ((pl.cdiv(B, 2) + 7) // 8) * 8    # split batch, keep multiple of 8
        bt = min(bt, batch_tile)
    else:
        bt = B                                  # tiny batch: single program
    return bt


def dr_solver_pallas(x, p, b, h, Q, A, G, *, batch_tile=512):
    """Forward pass of DRSolver for the concrete QP instantiation above.

    x : (B, x_dim) initial primal point
    p : (B, x_dim), b : (B, n_eq), h : (B, n_ineq)  -- per-batch parameters
    Q : (x_dim, x_dim) SPD, A : (n_eq, x_dim), G : (n_ineq, x_dim) -- fixed
    Returns (x_k_new, cnv_gap), both (B, x_dim + n_ineq).
    """
    f32 = jnp.float32
    B, d = x.shape
    ne, ni = A.shape[0], G.shape[0]
    n = d + ni           # slack-augmented variable dim
    m = ne + ni          # total constraint dim
    k = n - m            # null-space dim
    n_pad = ((n + 127) // 128) * 128   # lane-dense padding

    # slack-augmented start (module: cat((x, zeros(n_ineq))))
    x0 = jnp.concatenate([x, jnp.zeros((B, ni), f32)], axis=-1)

    # constant Jacobian of F(xs) = [A x - b ; G x - h + s] and Hessian of f
    J = jnp.concatenate(
        [jnp.concatenate([A, jnp.zeros((ne, ni), f32)], axis=1),
         jnp.concatenate([G, jnp.eye(ni, dtype=f32)], axis=1)], axis=0)   # (m, n)
    Hf = jnp.zeros((n, n), f32).at[:d, :d].set(Q)
    Md = (GAMMA / 2.0) * jnp.eye(n, dtype=f32) + Hf     # metric = Identity

    # --- prefactor + algebraic fusion (iteration/batch invariant) -----------
    # Mirrors foF.prefactor; done at 'highest' matmul precision *locally*
    # (no process-global config side effect).
    with jax.default_matmul_precision("highest"):
        Qc, Rc = jnp.linalg.qr(J.T, mode="complete")     # Qc (n,n), Rc (n,m)
        Rr = Rc[:m, :]                                   # (m, m) upper triangular
        Qr = Qc[:, :m]                                   # (n, m)
        Qn = Qc[:, m:]                                   # (n, k)
        L = jnp.linalg.cholesky(Qn.T @ Md @ Qn)
        # TODO(synk): per-iteration triangular solves of the reference are replaced
        # by explicit precomputed inverses/projectors (factors are fixed here);
        # check conditioning of Rr / L for production QPs.
        RrTinv = jax.scipy.linalg.solve_triangular(Rr.T, jnp.eye(m, dtype=f32),
                                                   lower=True)
        Linv = jax.scipy.linalg.solve_triangular(L, jnp.eye(k, dtype=f32),
                                                 lower=True)
        # null-space projector  P = Qn (Qn^T Md Qn)^{-1} Qn^T   (symmetric)
        P = Qn @ (Linv.T @ (Linv @ Qn.T))
        # fused linear DR step:  z = v @ Wfused + cfused   (row-vector convention)
        Wfused = (Md - (GAMMA / 2.0) * Hf) @ P           # (n, n)

        # loop-invariant pieces: F affine with constant J  =>  -F(v)+Jv == -cb
        cb = jnp.concatenate([-b, -h], axis=-1)                        # (B, m)
        pvec = jnp.concatenate([p, jnp.zeros((B, ni), f32)], axis=-1)  # (B, n)
        zeta = (-cb) @ RrTinv.T @ Qr.T                                 # (B, n)
        cfused = (-(zeta @ Md) - (GAMMA / 2.0) * pvec) @ P + zeta      # (B, n)

    # batch tile selection + batch padding (clean tails, >=2 programs when possible)
    bt = _pick_batch_tile(B, batch_tile)
    B_pad = pl.cdiv(B, bt) * bt
    grid = (B_pad // bt,)

    # lane-dense zero padding; padded coordinates / rows stay identically zero
    # (lb=ub=0 there, W pad rows/cols are zero, cfused pad is zero).
    lane_pad = n_pad - n
    row_pad = B_pad - B
    x0_p = jnp.pad(x0, ((0, row_pad), (0, lane_pad)))
    c_p = jnp.pad(cfused, ((0, row_pad), (0, lane_pad)))
    w_p = jnp.pad(Wfused, ((0, lane_pad), (0, lane_pad)))

    kernel = _make_dr_kernel(d, n, NUM_STEPS, BOUND)

    # advisory cost estimate so XLA can overlap wrapper-side prep with the call
    flops = int(2 * NUM_STEPS * B_pad * n_pad * n_pad)
    bytes_accessed = int(4 * (4 * B_pad * n_pad + n_pad * n_pad))
    cost = pl.CostEstimate(flops=flops, transcendentals=0,
                           bytes_accessed=bytes_accessed)

    x_p, gap_p = pl.pallas_call(
        kernel,
        out_shape=(jax.ShapeDtypeStruct((B_pad, n_pad), f32),
                   jax.ShapeDtypeStruct((B_pad, n_pad), f32)),
        grid=grid,
        in_specs=[pl.BlockSpec((bt, n_pad), lambda i: (i, 0)),       # x0
                  pl.BlockSpec((bt, n_pad), lambda i: (i, 0)),       # cfused
                  pl.BlockSpec((n_pad, n_pad), lambda i: (0, 0))],   # Wfused (grid-invariant)
        out_specs=(pl.BlockSpec((bt, n_pad), lambda i: (i, 0)),
                   pl.BlockSpec((bt, n_pad), lambda i: (i, 0))),
        input_output_aliases={0: 0},
        compiler_params=pltpu.CompilerParams(
            dimension_semantics=("parallel",),
            vmem_limit_bytes=48 * 1024 * 1024),
        cost_estimate=cost,
    )(x0_p, c_p, w_p)

    return x_p[:B, :n], gap_p[:B, :n]


def dr_solver_reference(x, p, b, h, Q, A, G):
    """Pure-JAX literal transcription of DRSolver.forward (for validation)."""
    f32 = jnp.float32
    B, d = x.shape
    ne, ni = A.shape[0], G.shape[0]
    n = d + ni
    m = ne + ni

    with jax.default_matmul_precision("highest"):
        xs = jnp.concatenate([x, jnp.zeros((B, ni), f32)], axis=-1)
        J = jnp.concatenate(
            [jnp.concatenate([A, jnp.zeros((ne, ni), f32)], axis=1),
             jnp.concatenate([G, jnp.eye(ni, dtype=f32)], axis=1)], axis=0)
        Hf = jnp.zeros((n, n), f32).at[:d, :d].set(Q)
        Md = (GAMMA / 2.0) * jnp.eye(n, dtype=f32) + Hf
        Qc, Rc = jnp.linalg.qr(J.T, mode="complete")
        Rr = Rc[:m, :]
        Qr = Qc[:, :m]
        Qn = Qc[:, m:]
        L = jnp.linalg.cholesky(Qn.T @ Md @ Qn)

        cb = jnp.concatenate([-b, -h], axis=-1)
        pvec = jnp.concatenate([p, jnp.zeros((B, ni), f32)], axis=-1)
        lb = jnp.concatenate([-BOUND * jnp.ones((d,), f32), jnp.zeros((ni,), f32)])
        ub = BOUND * jnp.ones((n,), f32)

        x_k = xs
        y = x_k
        z = x_k
        for _ in range(NUM_STEPS):
            y = lb + jax.nn.relu(ub - lb - jax.nn.relu(ub - x_k))
            v = 2.0 * y - x_k
            Fv = v @ J.T + cb
            bvec = -Fv + v @ J.T
            zeta_r = jax.scipy.linalg.solve_triangular(Rr.T, bvec.T, lower=True).T
            zeta = zeta_r @ Qr.T
            fg = v @ Hf + pvec
            zq = (v - zeta) @ Md - (GAMMA / 2.0) * fg
            zq = zq @ Qn
            zq = jax.scipy.linalg.solve_triangular(L, zq.T, lower=True).T
            zq = jax.scipy.linalg.solve_triangular(L.T, zq.T, lower=False).T
            zq = zq @ Qn.T
            z = zq + zeta
            x_k = x_k + (z - y)
        return x_k, (z - y) ** 2


if __name__ == "__main__":
    key = jax.random.PRNGKey(0)
    B, d, ne, ni = 8, 24, 8, 8          # batch, x_dim, n_eq, n_ineq

    k_q, k_a, k_g, k_x, k_p, k_b, k_h = jax.random.split(key, 7)
    M = jax.random.normal(k_q, (d, d), jnp.float32)
    Q = M @ M.T / d + jnp.eye(d, dtype=jnp.float32)          # SPD objective
    A = jax.random.normal(k_a, (ne, d), jnp.float32) / jnp.sqrt(d)
    G = jax.random.normal(k_g, (ni, d), jnp.float32) / jnp.sqrt(d)
    x = 0.5 * jax.random.normal(k_x, (B, d), jnp.float32)
    p = 0.3 * jax.random.normal(k_p, (B, d), jnp.float32)
    b = 0.2 * jax.random.normal(k_b, (B, ne), jnp.float32)
    h = 0.2 * jax.random.normal(k_h, (B, ni), jnp.float32) + 0.5

    x_new, cnv_gap = dr_solver_pallas(x, p, b, h, Q, A, G)
    jax.block_until_ready((x_new, cnv_gap))

    x_ref, gap_ref = dr_solver_reference(x, p, b, h, Q, A, G)
    assert jnp.allclose(x_new, x_ref, rtol=2e-2, atol=2e-2), "x_k mismatch"
    assert jnp.allclose(cnv_gap, gap_ref, rtol=2e-2, atol=2e-2), "cnv_gap mismatch"

    print("KERNEL_OK")
</pallas_src>

<mosaic_0001>
module attributes {stable_mosaic.version = 11 : i64} {
  func.func @kernel(%arg0: i32, %arg1: memref<8x128xf32, #tpu.memory_space<vmem>>, %arg2: memref<8x128xf32, #tpu.memory_space<vmem>>, %arg3: memref<128x128xf32, #tpu.memory_space<vmem>>, %arg4: memref<8x128xf32, #tpu.memory_space<vmem>>, %arg5: memref<8x128xf32, #tpu.memory_space<vmem>>) attributes {dimension_semantics = [#tpu.dimension_semantics<parallel>], iteration_bounds = array<i64: 1>, scalar_prefetch = 0 : i64, scratch_operands = 0 : i64, tpu.core_type = #tpu.core_type<tc>, window_params = [{transform_indices = @transform_0, window_bounds = array<i64: 8, 128>}, {transform_indices = @transform_1, window_bounds = array<i64: 8, 128>}, {pipeline_mode = #tpu.pipeline_mode<synchronous>, transform_indices = @transform_2, window_bounds = array<i64: 128, 128>}, {transform_indices = @transform_3, window_bounds = array<i64: 8, 128>}, {transform_indices = @transform_4, window_bounds = array<i64: 8, 128>}]} {
    %c0 = arith.constant 0 : index
    %c0_0 = arith.constant 0 : index
    %0 = vector.load %arg1[%c0, %c0_0] : memref<8x128xf32, #tpu.memory_space<vmem>>, vector<8x128xf32>
    %c0_1 = arith.constant 0 : index
    %c0_2 = arith.constant 0 : index
    %1 = vector.load %arg2[%c0_1, %c0_2] : memref<8x128xf32, #tpu.memory_space<vmem>>, vector<8x128xf32>
    %c0_3 = arith.constant 0 : index
    %c0_4 = arith.constant 0 : index
    %2 = vector.load %arg3[%c0_3, %c0_4] : memref<128x128xf32, #tpu.memory_space<vmem>>, vector<128x128xf32>
    %3 = tpu.iota {dimensions = array<i32: 1>} : vector<1x128xi32>
    %c24_i32 = arith.constant 24 : i32
    %4 = vector.broadcast %c24_i32 : i32 to vector<1x128xi32>
    %5 = arith.cmpi slt, %3, %4 : vector<1x128xi32>
    %cst = arith.constant -1.000000e+03 : f32
    %cst_5 = arith.constant 0.000000e+00 : f32
    %6 = vector.broadcast %cst : f32 to vector<1x128xf32>
    %7 = vector.broadcast %cst_5 : f32 to vector<1x128xf32>
    %8 = arith.select %5, %6, %7 : vector<1x128xi1>, vector<1x128xf32>
    %c32_i32 = arith.constant 32 : i32
    %9 = vector.broadcast %c32_i32 : i32 to vector<1x128xi32>
    %10 = arith.cmpi slt, %3, %9 : vector<1x128xi32>
    %cst_6 = arith.constant 1.000000e+03 : f32
    %cst_7 = arith.constant 0.000000e+00 : f32
    %11 = vector.broadcast %cst_6 : f32 to vector<1x128xf32>
    %12 = vector.broadcast %cst_7 : f32 to vector<1x128xf32>
    %13 = arith.select %10, %11, %12 : vector<1x128xi1>, vector<1x128xf32>
    %14 = vector.broadcast %8 : vector<1x128xf32> to vector<8x128xf32>
    %15 = arith.maximumf %0, %14 : vector<8x128xf32>
    %16 = vector.broadcast %13 : vector<1x128xf32> to vector<8x128xf32>
    %17 = arith.minimumf %15, %16 : vector<8x128xf32>
    %cst_8 = arith.constant 2.000000e+00 : f32
    %18 = vector.broadcast %cst_8 : f32 to vector<8x128xf32>
    %19 = arith.mulf %18, %17 : vector<8x128xf32>
    %20 = arith.subf %19, %0 : vector<8x128xf32>
    %cst_9 = arith.constant dense<0.000000e+00> : vector<8x128xf32>
    %21 = tpu.matmul %20, %2, %cst_9 {dimension_numbers = #tpu.dot_dimension_numbers<[1], [0], [0], [1], [0, 0, 1, 1], [], []>} : vector<8x128xf32>, vector<128x128xf32>, vector<8x128xf32> -> vector<8x128xf32>
    %22 = arith.addf %21, %1 : vector<8x128xf32>
    %23 = arith.subf %22, %17 : vector<8x128xf32>
    %24 = arith.addf %0, %23 : vector<8x128xf32>
    %25 = vector.broadcast %8 : vector<1x128xf32> to vector<8x128xf32>
    %26 = arith.maximumf %24, %25 : vector<8x128xf32>
    %27 = vector.broadcast %13 : vector<1x128xf32> to vector<8x128xf32>
    %28 = arith.minimumf %26, %27 : vector<8x128xf32>
    %cst_10 = arith.constant 2.000000e+00 : f32
    %29 = vector.broadcast %cst_10 : f32 to vector<8x128xf32>
    %30 = arith.mulf %29, %28 : vector<8x128xf32>
    %31 = arith.subf %30, %24 : vector<8x128xf32>
    %cst_11 = arith.constant dense<0.000000e+00> : vector<8x128xf32>
    %32 = tpu.matmul %31, %2, %cst_11 {dimension_numbers = #tpu.dot_dimension_numbers<[1], [0], [0], [1], [0, 0, 1, 1], [], []>} : vector<8x128xf32>, vector<128x128xf32>, vector<8x128xf32> -> vector<8x128xf32>
    %33 = arith.addf %32, %1 : vector<8x128xf32>
    %34 = arith.subf %33, %28 : vector<8x128xf32>
    %35 = arith.addf %24, %34 : vector<8x128xf32>
    %36 = vector.broadcast %8 : vector<1x128xf32> to vector<8x128xf32>
    %37 = arith.maximumf %35, %36 : vector<8x128xf32>
    %38 = vector.broadcast %13 : vector<1x128xf32> to vector<8x128xf32>
    %39 = arith.minimumf %37, %38 : vector<8x128xf32>
    %cst_12 = arith.constant 2.000000e+00 : f32
    %40 = vector.broadcast %cst_12 : f32 to vector<8x128xf32>
    %41 = arith.mulf %40, %39 : vector<8x128xf32>
    %42 = arith.subf %41, %35 : vector<8x128xf32>
    %cst_13 = arith.constant dense<0.000000e+00> : vector<8x128xf32>
    %43 = tpu.matmul %42, %2, %cst_13 {dimension_numbers = #tpu.dot_dimension_numbers<[1], [0], [0], [1], [0, 0, 1, 1], [], []>} : vector<8x128xf32>, vector<128x128xf32>, vector<8x128xf32> -> vector<8x128xf32>
    %44 = arith.addf %43, %1 : vector<8x128xf32>
    %45 = arith.subf %44, %39 : vector<8x128xf32>
    %46 = arith.addf %35, %45 : vector<8x128xf32>
    %c0_14 = arith.constant 0 : index
    %c0_15 = arith.constant 0 : index
    %47 = vector.load %arg4[%c0_14, %c0_15] : memref<8x128xf32, #tpu.memory_space<vmem>>, vector<8x128xf32>
    tpu.vector_store %arg4[%c0_14, %c0_15], %46 {strides = array<i32>} : memref<8x128xf32, #tpu.memory_space<vmem>>, vector<8x128xf32>,
    %48 = arith.mulf %45, %45 : vector<8x128xf32>
    %c0_16 = arith.constant 0 : index
    %c0_17 = arith.constant 0 : index
    %49 = vector.load %arg5[%c0_16, %c0_17] : memref<8x128xf32, #tpu.memory_space<vmem>>, vector<8x128xf32>
    tpu.vector_store %arg5[%c0_16, %c0_17], %48 {strides = array<i32>} : memref<8x128xf32, #tpu.memory_space<vmem>>, vector<8x128xf32>,
    return
  }
  func.func @transform_0(%arg0: i32) -> (i32, i32) {
    %c0_i32 = arith.constant 0 : i32
    %c0_i32_0 = arith.constant 0 : i32
    return %arg0, %c0_i32 : i32, i32
  }
  func.func @transform_1(%arg0: i32) -> (i32, i32) {
    %c0_i32 = arith.constant 0 : i32
    %c0_i32_0 = arith.constant 0 : i32
    return %arg0, %c0_i32 : i32, i32
  }
  func.func @transform_2(%arg0: i32) -> (i32, i32) {
    %c0_i32 = arith.constant 0 : i32
    %c0_i32_0 = arith.constant 0 : i32
    %c0_i32_1 = arith.constant 0 : i32
    return %c0_i32, %c0_i32_0 : i32, i32
  }
  func.func @transform_3(%arg0: i32) -> (i32, i32) {
    %c0_i32 = arith.constant 0 : i32
    %c0_i32_0 = arith.constant 0 : i32
    return %arg0, %c0_i32 : i32, i32
  }
  func.func @transform_4(%arg0: i32) -> (i32, i32) {
    %c0_i32 = arith.constant 0 : i32
    %c0_i32_0 = arith.constant 0 : i32
    return %arg0, %c0_i32 : i32, i32
  }
}

</mosaic_0001>

<llo_original>
// kernel: tpu_custom_call.1
$region0: #{tpu_custom_call.1}
  #allocation0 [shape = 'u32[]', space=smem, size = 0x4, offset = 0x4, fixed_abs, tag = 'smem constant byte address 0x4 - core index']
  #allocation1 [shape = 'u32[144,128]{1,0:T(1,128)}', space=vmem, size = 0x12000, scoped, tag = 'internal scratch']
  %s0 = inlined_call_operand.hbm [shape: f32[8,128], index: 0, kind: input, shape index: {}, may-alias: {0,3}]
  %s1 = inlined_call_operand.vmem [shape: f32[8,128], index: 1, kind: input, shape index: {}]
  %s2 = inlined_call_operand.hbm [shape: f32[128,128], index: 2, kind: input, shape index: {}]
  %s3 = inlined_call_operand.hbm [shape: f32[8,128], index: 3, kind: output, shape index: {0}, may-alias: {0,3}]
  %s4 = inlined_call_operand.hbm [shape: f32[8,128], index: 4, kind: output, shape index: {1}]
  %5 = xla_tuple %s3, %s4
  %s6 = sld [smem:[#allocation0]]
  $region38: #{tpu_custom_call.1} parent=0
    _
  %s8 = ssub.s32 1, %s6
  %s9 = scalar_select 0, %s8, %s6
  $region1: #{tpu_custom_call.1} parent=0
    #allocation2 [shape = 'u8[4096]{0}', space=vmem, size = 0x1000, scoped, tag = 'input window, operand 0, single buffered']
    #allocation3 [shape = 's32[1]{0}', space=sflag, size = 0x4, scoped, tag = 'scoped memory for tpu_custom_call.1']
    #allocation4 [shape = 's32[1]{0}', space=sflag, size = 0x4, scoped, tag = 'scoped memory for tpu_custom_call.1']
    #allocation5 [shape = 'u8[65536]{0}', space=vmem, size = 0x10000, scoped, tag = 'input window, operand 2, single buffered']
    #allocation6 [shape = 's32[1]{0}', space=sflag, size = 0x4, scoped, tag = 'scoped memory for tpu_custom_call.1']
    #allocation7 [shape = 'u8[4096]{0}', space=vmem, size = 0x1000, scoped, tag = 'output window, operand 0, single buffered']
    #allocation8 [shape = 'u8[4096]{0}', space=vmem, size = 0x1000, scoped, tag = 'output window, operand 1, single buffered']
    #allocation9 [shape = 's32[1]{0}', space=sflag, size = 0x4, scoped, tag = 'scoped memory for tpu_custom_call.1']
    %10 = vsyncpa [#allocation3], 0
    %11 = vsyncpa [#allocation6], 0
    %12 = vsyncpa [#allocation4], 0
    %13 = vsyncpa [#allocation9], 0
    // Predicated region
    $region2: #{tpu_custom_call.1} parent=1 // pred_check
      _
    $region3: #{tpu_custom_call.1} parent=1 // pred_check_branch
      %15 = sbr.rel (0) target = $region5
    $region4: #{tpu_custom_call.1} parent=1 // pred_region
      %s17 = ssub.s32 128, 128
      %18 = vsyncadd [#allocation3], %s17
      %s20 = sshll.u32 [#allocation2], 4
      %s21 = int_to_ptr.vmem [resolvable:$true] %s20
      %23 = dma.hbm_to_vmem [thread:$0]  %s0, 128, %s21, [#allocation3]
    $region5: #{tpu_custom_call.1} parent=1 // pred_fallthru
      _
    // Predicated region
    $region6: #{tpu_custom_call.1} parent=1 // pred_check
      _
    $region7: #{tpu_custom_call.1} parent=1 // pred_check_branch
      %25 = sbr.rel (0) target = $region9
    $region8: #{tpu_custom_call.1} parent=1 // pred_region
      _
    $region9: #{tpu_custom_call.1} parent=1 // pred_fallthru
      _
    // Predicated region
    $region10: #{tpu_custom_call.1} parent=1 // pred_check
      _
    $region11: #{tpu_custom_call.1} parent=1 // pred_check_branch
      %27 = sbr.rel (0) target = $region13
    $region12: #{tpu_custom_call.1} parent=1 // pred_region
      %s29 = ssub.s32 2048, 2048
      %30 = vsyncadd [#allocation6], %s29
      %s31 = sshll.u32 [#allocation5], 4
      %s32 = int_to_ptr.vmem [resolvable:$true] %s31
      %37 = dma.hbm_to_vmem [thread:$0]  %s2, 2048, %s32, [#allocation6], 128, 128, 8
    $region13: #{tpu_custom_call.1} parent=1 // pred_fallthru
      _
    // Predicated region
    $region14: #{tpu_custom_call.1} parent=1 // pred_check
      _
    $region15: #{tpu_custom_call.1} parent=1 // pred_check_branch
      %39 = sbr.rel (0) target = $region17
    $region16: #{tpu_custom_call.1} parent=1 // pred_region
      %40 = dma.done [#allocation3], 128
    $region17: #{tpu_custom_call.1} parent=1 // pred_fallthru
      _
    // Predicated region
    $region18: #{tpu_custom_call.1} parent=1 // pred_check
      _
    $region19: #{tpu_custom_call.1} parent=1 // pred_check_branch
      %42 = sbr.rel (0) target = $region21
    $region20: #{tpu_custom_call.1} parent=1 // pred_region
      %43 = dma.done [#allocation6], 2048
    $region21: #{tpu_custom_call.1} parent=1 // pred_fallthru
      _
    %v44 = vld [vmem:[#allocation2] sm:$0xff]
    %v45 = vld [vmem:[%s1] sm:$0xff]
    %v46 = vld [vmem:[#allocation5] sm:$0xff]
    %v47 = vld [vmem:[#allocation5 + $0x8] sm:$0xff]
    %v48 = vld [vmem:[#allocation5 + $0x10] sm:$0xff]
    %v49 = vld [vmem:[#allocation5 + $0x18] sm:$0xff]
    %v50 = vld [vmem:[#allocation5 + $0x20] sm:$0xff]
    %v51 = vld [vmem:[#allocation5 + $0x28] sm:$0xff]
    %v52 = vld [vmem:[#allocation5 + $0x30] sm:$0xff]
    %v53 = vld [vmem:[#allocation5 + $0x38] sm:$0xff]
    %v54 = vld [vmem:[#allocation5 + $0x40] sm:$0xff]
    %v55 = vld [vmem:[#allocation5 + $0x48] sm:$0xff]
    %v56 = vld [vmem:[#allocation5 + $0x50] sm:$0xff]
    %v57 = vld [vmem:[#allocation5 + $0x58] sm:$0xff]
    %v58 = vld [vmem:[#allocation5 + $0x60] sm:$0xff]
    %v59 = vld [vmem:[#allocation5 + $0x68] sm:$0xff]
    %v60 = vld [vmem:[#allocation5 + $0x70] sm:$0xff]
    %v61 = vld [vmem:[#allocation5 + $0x78] sm:$0xff]
    %v62 = vlaneseq
    %v63 = vand.u32 %v62, 127
    %vm64 = vcmp.lt.s32.totalorder %v63, 24
    %v65 = vsel %vm64, -1000.0, 0.0
    %vm66 = vcmp.lt.s32.totalorder %v63, 32
    %v67 = vsel %vm66, 1000.0, 0.0
    %v68 = vmax.f32 %v44, %v65
    %v69 = vmin.f32 %v68, %v67
    %v70 = vmul.f32 %v69, 2.0
    %v71 = vsub.f32 %v70, %v44
    %72 = vmatprep.subr.mxu0 0.0
    %73 = vmatpush1.msra.mxu0 %v46
    %74 = vmatprep.subr.mxu0 0.0
    %75 = vmatpush1.msra.mxu0 %v47
    %76 = vmatprep.subr.mxu0 0.0
    %77 = vmatpush1.msra.mxu0 %v48
    %78 = vmatprep.subr.mxu0 0.0
    %79 = vmatpush1.msra.mxu0 %v49
    %80 = vmatprep.subr.mxu0 0.0
    %81 = vmatpush1.msra.mxu0 %v50
    %82 = vmatprep.subr.mxu0 0.0
    %83 = vmatpush1.msra.mxu0 %v51
    %84 = vmatprep.subr.mxu0 0.0
    %85 = vmatpush1.msra.mxu0 %v52
    %86 = vmatprep.subr.mxu0 0.0
    %87 = vmatpush1.msra.mxu0 %v53
    %88 = vmatprep.subr.mxu0 0.0
    %89 = vmatpush1.msra.mxu0 %v54
    %90 = vmatprep.subr.mxu0 0.0
    %91 = vmatpush1.msra.mxu0 %v55
    %92 = vmatprep.subr.mxu0 0.0
    %93 = vmatpush1.msra.mxu0 %v56
    %94 = vmatprep.subr.mxu0 0.0
    %95 = vmatpush1.msra.mxu0 %v57
    %96 = vmatprep.subr.mxu0 0.0
    %97 = vmatpush1.msra.mxu0 %v58
    %98 = vmatprep.subr.mxu0 0.0
    %99 = vmatpush1.msra.mxu0 %v59
    %100 = vmatprep.subr.mxu0 0.0
    %101 = vmatpush1.msra.mxu0 %v60
    %102 = vmatprep.subr.mxu0 0.0
    %103 = vmatpush1.msra.mxu0 %v61
    %104 = vmatprep.subr.mxu0 0.0
    %105 = vmatpush1.msra.mxu0 0.0
    %106 = vmatprep.subr.mxu0 0.0
    %107 = vmatpush1.msra.mxu0 0.0
    %108 = vmatprep.subr.mxu0 0.0
    %109 = vmatpush1.msra.mxu0 0.0
    %110 = vmatprep.subr.mxu0 0.0
    %111 = vmatpush1.msra.mxu0 0.0
    %112 = vmatprep.subr.mxu0 0.0
    %113 = vmatpush1.msra.mxu0 0.0
    %114 = vmatprep.subr.mxu0 0.0
    %115 = vmatpush1.msra.mxu0 0.0
    %116 = vmatprep.subr.mxu0 0.0
    %117 = vmatpush1.msra.mxu0 0.0
    %118 = vmatprep.subr.mxu0 0.0
    %119 = vmatpush1.msra.mxu0 0.0
    %120 = vmatprep.subr.mxu0 0.0
    %121 = vmatpush1.msra.mxu0 0.0
    %122 = vmatprep.subr.mxu0 0.0
    %123 = vmatpush1.msra.mxu0 0.0
    %124 = vmatprep.subr.mxu0 0.0
    %125 = vmatpush1.msra.mxu0 0.0
    %126 = vmatprep.subr.mxu0 0.0
    %127 = vmatpush1.msra.mxu0 0.0
    %128 = vmatprep.subr.mxu0 0.0
    %129 = vmatpush1.msra.mxu0 0.0
    %130 = vmatprep.subr.mxu0 0.0
    %131 = vmatpush1.msra.mxu0 0.0
    %132 = vmatprep.subr.mxu0 0.0
    %133 = vmatpush1.msra.mxu0 0.0
    %134 = vmatprep.subr.mxu0 0.0
    %135 = vmatpush1.msra.mxu0 0.0
    %136 = vmatprep.mubr.f32.mxu0 0.0
    %137 = vmatmul.mubr.f32.gmra.mrb[0].mxu0 %v71
    %v138 = vpop.f32.mrb[0].mxu0
    %v139 = vadd.f32 %v45, %v138
    %v140 = vpop.f32.mrb[0].mxu0
    %141 = vdwg.mxu0
    %v142 = vsub.f32 %v139, %v69
    %v143 = vadd.f32 %v44, %v142
    %v144 = vmax.f32 %v143, %v65
    %v145 = vmin.f32 %v144, %v67
    %v146 = vmul.f32 %v145, 2.0
    %v147 = vsub.f32 %v146, %v143
    %148 = vmatprep.subr.mxu0 0.0
    %149 = vmatpush1.msra.mxu0 %v46
    %150 = vmatprep.subr.mxu0 0.0
    %151 = vmatpush1.msra.mxu0 %v47
    %152 = vmatprep.subr.mxu0 0.0
    %153 = vmatpush1.msra.mxu0 %v48
    %154 = vmatprep.subr.mxu0 0.0
    %155 = vmatpush1.msra.mxu0 %v49
    %156 = vmatprep.subr.mxu0 0.0
    %157 = vmatpush1.msra.mxu0 %v50
    %158 = vmatprep.subr.mxu0 0.0
    %159 = vmatpush1.msra.mxu0 %v51
    %160 = vmatprep.subr.mxu0 0.0
    %161 = vmatpush1.msra.mxu0 %v52
    %162 = vmatprep.subr.mxu0 0.0
    %163 = vmatpush1.msra.mxu0 %v53
    %164 = vmatprep.subr.mxu0 0.0
    %165 = vmatpush1.msra.mxu0 %v54
    %166 = vmatprep.subr.mxu0 0.0
    %167 = vmatpush1.msra.mxu0 %v55
    %168 = vmatprep.subr.mxu0 0.0
    %169 = vmatpush1.msra.mxu0 %v56
    %170 = vmatprep.subr.mxu0 0.0
    %171 = vmatpush1.msra.mxu0 %v57
    %172 = vmatprep.subr.mxu0 0.0
    %173 = vmatpush1.msra.mxu0 %v58
    %174 = vmatprep.subr.mxu0 0.0
    %175 = vmatpush1.msra.mxu0 %v59
    %176 = vmatprep.subr.mxu0 0.0
    %177 = vmatpush1.msra.mxu0 %v60
    %178 = vmatprep.subr.mxu0 0.0
    %179 = vmatpush1.msra.mxu0 %v61
    %180 = vmatprep.subr.mxu0 0.0
    %181 = vmatpush1.msra.mxu0 0.0
    %182 = vmatprep.subr.mxu0 0.0
    %183 = vmatpush1.msra.mxu0 0.0
    %184 = vmatprep.subr.mxu0 0.0
    %185 = vmatpush1.msra.mxu0 0.0
    %186 = vmatprep.subr.mxu0 0.0
    %187 = vmatpush1.msra.mxu0 0.0
    %188 = vmatprep.subr.mxu0 0.0
    %189 = vmatpush1.msra.mxu0 0.0
    %190 = vmatprep.subr.mxu0 0.0
    %191 = vmatpush1.msra.mxu0 0.0
    %192 = vmatprep.subr.mxu0 0.0
    %193 = vmatpush1.msra.mxu0 0.0
    %194 = vmatprep.subr.mxu0 0.0
    %195 = vmatpush1.msra.mxu0 0.0
    %196 = vmatprep.subr.mxu0 0.0
    %197 = vmatpush1.msra.mxu0 0.0
    %198 = vmatprep.subr.mxu0 0.0
    %199 = vmatpush1.msra.mxu0 0.0
    %200 = vmatprep.subr.mxu0 0.0
    %201 = vmatpush1.msra.mxu0 0.0
    %202 = vmatprep.subr.mxu0 0.0
    %203 = vmatpush1.msra.mxu0 0.0
    %204 = vmatprep.subr.mxu0 0.0
    %205 = vmatpush1.msra.mxu0 0.0
    %206 = vmatprep.subr.mxu0 0.0
    %207 = vmatpush1.msra.mxu0 0.0
    %208 = vmatprep.subr.mxu0 0.0
    %209 = vmatpush1.msra.mxu0 0.0
    %210 = vmatprep.subr.mxu0 0.0
    %211 = vmatpush1.msra.mxu0 0.0
    %212 = vmatprep.mubr.f32.mxu0 0.0
    %213 = vmatmul.mubr.f32.gmra.mrb[0].mxu0 %v147
    %v214 = vpop.f32.mrb[0].mxu0
    %v215 = vadd.f32 %v45, %v214
    %v216 = vpop.f32.mrb[0].mxu0
    %217 = vdwg.mxu0
    %v218 = vsub.f32 %v215, %v145
    %v219 = vadd.f32 %v143, %v218
    %v220 = vmax.f32 %v219, %v65
    %v221 = vmin.f32 %v220, %v67
    %v222 = vmul.f32 %v221, 2.0
    %v223 = vsub.f32 %v222, %v219
    %224 = vmatprep.subr.mxu0 0.0
    %225 = vmatpush1.msra.mxu0 %v46
    %226 = vmatprep.subr.mxu0 0.0
    %227 = vmatpush1.msra.mxu0 %v47
    %228 = vmatprep.subr.mxu0 0.0
    %229 = vmatpush1.msra.mxu0 %v48
    %230 = vmatprep.subr.mxu0 0.0
    %231 = vmatpush1.msra.mxu0 %v49
    %232 = vmatprep.subr.mxu0 0.0
    %233 = vmatpush1.msra.mxu0 %v50
    %234 = vmatprep.subr.mxu0 0.0
    %235 = vmatpush1.msra.mxu0 %v51
    %236 = vmatprep.subr.mxu0 0.0
    %237 = vmatpush1.msra.mxu0 %v52
    %238 = vmatprep.subr.mxu0 0.0
    %239 = vmatpush1.msra.mxu0 %v53
    %240 = vmatprep.subr.mxu0 0.0
    %241 = vmatpush1.msra.mxu0 %v54
    %242 = vmatprep.subr.mxu0 0.0
    %243 = vmatpush1.msra.mxu0 %v55
    %244 = vmatprep.subr.mxu0 0.0
    %245 = vmatpush1.msra.mxu0 %v56
    %246 = vmatprep.subr.mxu0 0.0
    %247 = vmatpush1.msra.mxu0 %v57
    %248 = vmatprep.subr.mxu0 0.0
    %249 = vmatpush1.msra.mxu0 %v58
    %250 = vmatprep.subr.mxu0 0.0
    %251 = vmatpush1.msra.mxu0 %v59
    %252 = vmatprep.subr.mxu0 0.0
    %253 = vmatpush1.msra.mxu0 %v60
    %254 = vmatprep.subr.mxu0 0.0
    %255 = vmatpush1.msra.mxu0 %v61
    %256 = vmatprep.subr.mxu0 0.0
    %257 = vmatpush1.msra.mxu0 0.0
    %258 = vmatprep.subr.mxu0 0.0
    %259 = vmatpush1.msra.mxu0 0.0
    %260 = vmatprep.subr.mxu0 0.0
    %261 = vmatpush1.msra.mxu0 0.0
    %262 = vmatprep.subr.mxu0 0.0
    %263 = vmatpush1.msra.mxu0 0.0
    %264 = vmatprep.subr.mxu0 0.0
    %265 = vmatpush1.msra.mxu0 0.0
    %266 = vmatprep.subr.mxu0 0.0
    %267 = vmatpush1.msra.mxu0 0.0
    %268 = vmatprep.subr.mxu0 0.0
    %269 = vmatpush1.msra.mxu0 0.0
    %270 = vmatprep.subr.mxu0 0.0
    %271 = vmatpush1.msra.mxu0 0.0
    %272 = vmatprep.subr.mxu0 0.0
    %273 = vmatpush1.msra.mxu0 0.0
    %274 = vmatprep.subr.mxu0 0.0
    %275 = vmatpush1.msra.mxu0 0.0
    %276 = vmatprep.subr.mxu0 0.0
    %277 = vmatpush1.msra.mxu0 0.0
    %278 = vmatprep.subr.mxu0 0.0
    %279 = vmatpush1.msra.mxu0 0.0
    %280 = vmatprep.subr.mxu0 0.0
    %281 = vmatpush1.msra.mxu0 0.0
    %282 = vmatprep.subr.mxu0 0.0
    %283 = vmatpush1.msra.mxu0 0.0
    %284 = vmatprep.subr.mxu0 0.0
    %285 = vmatpush1.msra.mxu0 0.0
    %286 = vmatprep.subr.mxu0 0.0
    %287 = vmatpush1.msra.mxu0 0.0
    %288 = vmatprep.mubr.f32.mxu0 0.0
    %289 = vmatmul.mubr.f32.gmra.mrb[0].mxu0 %v223
    %v290 = vpop.f32.mrb[0].mxu0
    %v291 = vadd.f32 %v45, %v290
    %v292 = vpop.f32.mrb[0].mxu0
    %293 = vdwg.mxu0
    %v294 = vsub.f32 %v291, %v221
    %v295 = vadd.f32 %v219, %v294
    %296 = vst [vmem:[#allocation7] sm:$0xff] %v295
    %v297 = vmul.f32 %v294, %v294
    %298 = vst [vmem:[#allocation8] sm:$0xff] %v297
    // Predicated region
    $region22: #{tpu_custom_call.1} parent=1 // pred_check
      _
    $region23: #{tpu_custom_call.1} parent=1 // pred_check_branch
      %300 = sbr.rel (0) target = $region25
    $region24: #{tpu_custom_call.1} parent=1 // pred_region
      %s302 = ssub.s32 128, 128
      %303 = vsyncadd [#allocation4], %s302
      %s305 = sshll.u32 [#allocation7], 4
      %s306 = int_to_ptr.vmem [resolvable:$true] %s305
      %308 = dma.vmem_to_hbm [thread:$0]  %s306, 128, %s3, [#allocation4]
    $region25: #{tpu_custom_call.1} parent=1 // pred_fallthru
      _
    // Predicated region
    $region26: #{tpu_custom_call.1} parent=1 // pred_check
      _
    $region27: #{tpu_custom_call.1} parent=1 // pred_check_branch
      %310 = sbr.rel (0) target = $region29
    $region28: #{tpu_custom_call.1} parent=1 // pred_region
      %s312 = ssub.s32 128, 128
      %313 = vsyncadd [#allocation9], %s312
      %s315 = sshll.u32 [#allocation8], 4
      %s316 = int_to_ptr.vmem [resolvable:$true] %s315
      %318 = dma.vmem_to_hbm [thread:$0]  %s316, 128, %s4, [#allocation9]
    $region29: #{tpu_custom_call.1} parent=1 // pred_fallthru
      _
    // Predicated region
    $region30: #{tpu_custom_call.1} parent=1 // pred_check
      _
    $region31: #{tpu_custom_call.1} parent=1 // pred_check_branch
      %320 = sbr.rel (0) target = $region33
    $region32: #{tpu_custom_call.1} parent=1 // pred_region
      %321 = dma.done [#allocation4], 128
    $region33: #{tpu_custom_call.1} parent=1 // pred_fallthru
      _
    // Predicated region
    $region34: #{tpu_custom_call.1} parent=1 // pred_check
      _
    $region35: #{tpu_custom_call.1} parent=1 // pred_check_branch
      %323 = sbr.rel (0) target = $region37
    $region36: #{tpu_custom_call.1} parent=1 // pred_region
      %324 = dma.done [#allocation9], 128
    $region37: #{tpu_custom_call.1} parent=1 // pred_fallthru
      _
    %325 = vsyncpa [#allocation3], 1
    %326 = vsyncpa [#allocation6], 1
    %327 = vsyncpa [#allocation4], 1
    %328 = vsyncpa [#allocation9], 1

</llo_original>
